<compile_context>
chip_gen: v7x
topology: tpu7x:2x2x1
jax: 0.10.0
libtpu: 0.0.40
codegen_flags: <defaults>
</compile_context>

<pallas_src>
import functools
import math

import jax
import jax.numpy as jnp
from jax import lax
from jax.experimental import pallas as pl
from jax.experimental.pallas import tpu as pltpu


def _round_up(v, m):
    return (v + m - 1) // m * m


def _ghost_kernel(x_ref, w1_ref, b1_ref, wdw_ref, b2_ref, mask_ref, o_ref, *,
                  width, relu):
    """One image per grid step.

    x_ref    : (Cin, HW)        image; channels on sublanes, pixels on lanes
    w1_ref   : (Cin, Cinit, 1)  1x1 conv weight with BN scale pre-folded
    b1_ref   : (Cinit, 1)       folded BN bias (primary conv)
    wdw_ref  : (9, Cnew, 1)     depthwise 3x3 weights (tap-major), BN scale folded
    b2_ref   : (Cnew, 1)        folded BN bias (cheap op)
    mask_ref : (9, HW)          1.0 where tap (ki,kj) is in-bounds, else 0.0
    o_ref    : (oup, HW)        output image
    """
    cin, hw = x_ref.shape
    cinit = w1_ref.shape[1]
    oup = o_ref.shape[0]

    # ---- primary conv: 1x1 conv (+ folded BN) as Cin VPU broadcast-FMAs -----
    # TODO(synk): use an MXU matmul path (bf16 in / f32 acc) when Cin*Cinit is
    #             large enough to fill MXU passes.
    acc1 = x_ref[0:1, :] * w1_ref[0]                  # (1,HW)*(Cinit,1)->(Cinit,HW)
    for ci in range(1, cin):
        acc1 = acc1 + x_ref[ci:ci + 1, :] * w1_ref[ci]
    x1 = acc1 + b1_ref[...]
    if relu:
        x1 = jnp.maximum(x1, 0.0)
    # channel-range store #1 (review: no placement matmuls)
    o_ref[0:cinit, :] = x1.astype(o_ref.dtype)

    # ---- cheap op: depthwise 3x3 via XLU lane-rolls + edge masks ------------
    if oup > cinit:
        acc2 = x1 * wdw_ref[4]                        # centre tap, no mask
        for ki in range(3):
            for kj in range(3):
                if ki == 1 and kj == 1:
                    continue
                t = ki * 3 + kj
                # out(h,w) tap reads in(h+ki-1, w+kj-1): a lane roll of the
                # flattened H*W axis by (1-ki)*W + (1-kj) (np.roll convention).
                shift = ((1 - ki) * width + (1 - kj)) % hw
                v = pltpu.roll(x1, shift, axis=1)
                # select (not multiply) so wrapped/garbage lanes never leak
                v = jnp.where(mask_ref[t:t + 1, :] > 0.5, v, 0.0)
                acc2 = acc2 + v * wdw_ref[t]
        x2 = acc2 + b2_ref[...]
        if relu:
            x2 = jnp.maximum(x2, 0.0)
        # channel-range store #2 (implements concat(...)[:, :oup])
        o_ref[cinit:oup, :] = x2[0:oup - cinit, :].astype(o_ref.dtype)


def ghost_module_pallas(x_nchw, w1_oihw, s1, b1, wdw_oihw, s2, b2, oup, *,
                        relu=True):
    """GhostModule forward (kernel_size=1, ratio=2, dw_size=3, stride=1).

    x_nchw   : (N, Cin, H, W) float32
    w1_oihw  : (Cinit, Cin, 1, 1)  primary 1x1 conv weight (PyTorch OIHW)
    s1, b1   : (Cinit,)            folded BatchNorm scale / bias (primary)
    wdw_oihw : (Cnew, 1, 3, 3)     depthwise conv weight (OIHW, groups=Cinit)
    s2, b2   : (Cnew,)             folded BatchNorm scale / bias (cheap op)
    Returns  : (N, oup, H, W)
    """
    N, Cin, H, W = x_nchw.shape
    Cinit = w1_oihw.shape[0]
    Cnew = wdw_oihw.shape[0]
    HW = H * W
    assert Cnew == Cinit, "only ratio=2 supported (see TODO at top of file)"
    assert Cinit <= oup <= Cinit + Cnew
    assert w1_oihw.shape[2:] == (1, 1) and wdw_oihw.shape[1:] == (1, 3, 3)

    # Lane-dense layout: fold H*W onto the lane axis (contiguous reshape, free).
    x_flat = x_nchw.reshape(N, Cin, HW)

    # Fold the BN scales into the conv weights (done once, wrapper-side).
    w1 = (jnp.transpose(w1_oihw[:, :, 0, 0], (1, 0))
          * s1[None, :]).reshape(Cin, Cinit, 1).astype(jnp.float32)
    wdw = (jnp.transpose(wdw_oihw[:, 0, :, :], (1, 2, 0))
           * s2[None, None, :]).reshape(9, Cnew, 1).astype(jnp.float32)
    b1c = b1.reshape(Cinit, 1).astype(jnp.float32)
    b2c = b2.reshape(Cnew, 1).astype(jnp.float32)

    # Edge-validity masks for the 9 depthwise taps (computed once; lets the
    # in-kernel H/W shifts be pure lane rolls with no padded scratch).
    hh = jnp.arange(H).reshape(H, 1)
    ww = jnp.arange(W).reshape(1, W)
    rows = []
    for ki in range(3):
        for kj in range(3):
            valid = ((hh + ki - 1 >= 0) & (hh + ki - 1 < H) &
                     (ww + kj - 1 >= 0) & (ww + kj - 1 < W))
            rows.append(valid.reshape(HW))
    mask = jnp.stack(rows, axis=0).astype(jnp.float32)            # (9, HW)

    # Generation-aware VMEM sizing with padded (8,128) accounting + 2x buffers.
    try:
        vmem_cap = int(pltpu.get_tpu_info().vmem_capacity_bytes)
    except Exception:
        vmem_cap = 64 * 1024 * 1024
    vmem_limit = min(vmem_cap * 3 // 4, 96 * 1024 * 1024)
    lanes = _round_up(HW, 128)
    est = 2 * 4 * lanes * (_round_up(Cin, 8) + _round_up(oup, 8))   # x/o blocks
    est += 2 * 4 * lanes * _round_up(9, 8)                          # tap masks
    est += 2 * 4 * 8 * 128 * (Cin + 9 + 2)                          # small params
    est += 8 * 4 * _round_up(Cinit, 8) * lanes                      # temporaries
    assert est <= vmem_limit, f"per-step VMEM estimate {est} > {vmem_limit}"

    kernel = functools.partial(_ghost_kernel, width=W, relu=relu)

    out_flat = pl.pallas_call(
        kernel,
        out_shape=jax.ShapeDtypeStruct((N, oup, HW), x_nchw.dtype),
        # One image per step: >= 2 parallel steps whenever N >= 2 (v7x megacore),
        # and no cross-step state so "parallel" sharding is always safe.
        grid=(N,),
        in_specs=[
            pl.BlockSpec((None, Cin, HW), lambda b: (b, 0, 0)),
            # Grid-invariant operands below; at production widths these should
            # be single-buffered / staged to persistent scratch (see TODO).
            pl.BlockSpec((Cin, Cinit, 1), lambda b: (0, 0, 0)),
            pl.BlockSpec((Cinit, 1), lambda b: (0, 0)),
            pl.BlockSpec((9, Cnew, 1), lambda b: (0, 0, 0)),
            pl.BlockSpec((Cnew, 1), lambda b: (0, 0)),
            pl.BlockSpec((9, HW), lambda b: (0, 0)),
        ],
        out_specs=pl.BlockSpec((None, oup, HW), lambda b: (b, 0, 0)),
        compiler_params=pltpu.CompilerParams(
            dimension_semantics=("parallel",),
            vmem_limit_bytes=vmem_limit,
        ),
    )(x_flat, w1, b1c, wdw, b2c, mask)

    return out_flat.reshape(N, oup, H, W)


def _fold_bn(gamma, beta, mean, var, eps=1e-5):
    scale = gamma / jnp.sqrt(var + eps)
    bias = beta - mean * scale
    return scale, bias


def _reference_nchw(x, w1_oihw, s1, b1, wdw_oihw, s2, b2, oup, groups):
    """Pure-JAX reference with the same semantics as the PyTorch module."""
    dn = ('NCHW', 'OIHW', 'NCHW')
    x1 = lax.conv_general_dilated(x, w1_oihw, (1, 1), [(0, 0), (0, 0)],
                                  dimension_numbers=dn)
    x1 = jnp.maximum(x1 * s1[None, :, None, None] + b1[None, :, None, None], 0.0)
    x2 = lax.conv_general_dilated(x1, wdw_oihw, (1, 1), [(1, 1), (1, 1)],
                                  dimension_numbers=dn,
                                  feature_group_count=groups)
    x2 = jnp.maximum(x2 * s2[None, :, None, None] + b2[None, :, None, None], 0.0)
    return jnp.concatenate([x1, x2], axis=1)[:, :oup, :, :]


if __name__ == "__main__":
    # GhostModule(inp=4, oup=8, kernel_size=1, ratio=2, dw_size=3, stride=1)
    N, Cin, H, W = 2, 4, 16, 16
    oup, ratio = 8, 2
    Cinit = math.ceil(oup / ratio)          # 4
    Cnew = Cinit * (ratio - 1)              # 4

    ks = jax.random.split(jax.random.PRNGKey(0), 11)
    x = jax.random.normal(ks[0], (N, Cin, H, W), jnp.float32)

    # Deterministic synthetic parameters in PyTorch layouts.
    w1_oihw = 0.5 * jax.random.normal(ks[1], (Cinit, Cin, 1, 1), jnp.float32)
    wdw_oihw = 0.5 * jax.random.normal(ks[2], (Cnew, 1, 3, 3), jnp.float32)
    gamma1 = jax.random.uniform(ks[3], (Cinit,), minval=0.5, maxval=1.5)
    beta1 = 0.1 * jax.random.normal(ks[4], (Cinit,))
    mean1 = 0.1 * jax.random.normal(ks[5], (Cinit,))
    var1 = jax.random.uniform(ks[6], (Cinit,), minval=0.5, maxval=1.5)
    gamma2 = jax.random.uniform(ks[7], (Cnew,), minval=0.5, maxval=1.5)
    beta2 = 0.1 * jax.random.normal(ks[8], (Cnew,))
    mean2 = 0.1 * jax.random.normal(ks[9], (Cnew,))
    var2 = jax.random.uniform(ks[10], (Cnew,), minval=0.5, maxval=1.5)

    s1, b1 = _fold_bn(gamma1, beta1, mean1, var1)
    s2, b2 = _fold_bn(gamma2, beta2, mean2, var2)

    out = ghost_module_pallas(x, w1_oihw, s1, b1, wdw_oihw, s2, b2, oup)
    out = jax.block_until_ready(out)

    ref = _reference_nchw(x, w1_oihw, s1, b1, wdw_oihw, s2, b2, oup,
                          groups=Cinit)
    assert out.shape == (N, oup, H, W)
    max_err = float(jnp.max(jnp.abs(out - ref)))
    assert jnp.allclose(out, ref, atol=1e-4, rtol=1e-4), max_err
    print("KERNEL_OK")
</pallas_src>

<mosaic_0001>
module attributes {stable_mosaic.version = 11 : i64} {
  func.func @_ghost_kernel(%arg0: i32, %arg1: memref<1x4x256xf32, #tpu.memory_space<vmem>>, %arg2: memref<4x4x1xf32, #tpu.memory_space<vmem>>, %arg3: memref<4x1xf32, #tpu.memory_space<vmem>>, %arg4: memref<9x4x1xf32, #tpu.memory_space<vmem>>, %arg5: memref<4x1xf32, #tpu.memory_space<vmem>>, %arg6: memref<9x256xf32, #tpu.memory_space<vmem>>, %arg7: memref<1x8x256xf32, #tpu.memory_space<vmem>>) attributes {dimension_semantics = [#tpu.dimension_semantics<parallel>], iteration_bounds = array<i64: 2>, scalar_prefetch = 0 : i64, scratch_operands = 0 : i64, tpu.core_type = #tpu.core_type<tc>, window_params = [{transform_indices = @transform_0, window_bounds = array<i64: 1, 4, 256>}, {pipeline_mode = #tpu.pipeline_mode<synchronous>, transform_indices = @transform_1, window_bounds = array<i64: 4, 4, 1>}, {pipeline_mode = #tpu.pipeline_mode<synchronous>, transform_indices = @transform_2, window_bounds = array<i64: 4, 1>}, {pipeline_mode = #tpu.pipeline_mode<synchronous>, transform_indices = @transform_3, window_bounds = array<i64: 9, 4, 1>}, {pipeline_mode = #tpu.pipeline_mode<synchronous>, transform_indices = @transform_4, window_bounds = array<i64: 4, 1>}, {pipeline_mode = #tpu.pipeline_mode<synchronous>, transform_indices = @transform_5, window_bounds = array<i64: 9, 256>}, {transform_indices = @transform_6, window_bounds = array<i64: 1, 8, 256>}]} {
    %c0 = arith.constant 0 : index
    %c0_0 = arith.constant 0 : index
    %c0_1 = arith.constant 0 : index
    %0 = vector.load %arg1[%c0, %c0_0, %c0_1] : memref<1x4x256xf32, #tpu.memory_space<vmem>>, vector<1x1x256xf32>
    %1 = vector.shape_cast %0 : vector<1x1x256xf32> to vector<1x256xf32>
    %c0_2 = arith.constant 0 : index
    %c0_3 = arith.constant 0 : index
    %c0_4 = arith.constant 0 : index
    %2 = vector.load %arg2[%c0_2, %c0_3, %c0_4] : memref<4x4x1xf32, #tpu.memory_space<vmem>>, vector<1x4x1xf32>
    %3 = vector.shape_cast %2 : vector<1x4x1xf32> to vector<4x1xf32>
    %4 = vector.broadcast %1 : vector<1x256xf32> to vector<4x256xf32>
    %5 = vector.broadcast %3 : vector<4x1xf32> to vector<4x256xf32>
    %6 = arith.mulf %4, %5 : vector<4x256xf32>
    %c0_5 = arith.constant 0 : index
    %c1 = arith.constant 1 : index
    %c0_6 = arith.constant 0 : index
    %7 = vector.load %arg1[%c0_5, %c1, %c0_6] : memref<1x4x256xf32, #tpu.memory_space<vmem>>, vector<1x1x256xf32>
    %8 = vector.shape_cast %7 : vector<1x1x256xf32> to vector<1x256xf32>
    %c1_7 = arith.constant 1 : index
    %c0_8 = arith.constant 0 : index
    %c0_9 = arith.constant 0 : index
    %9 = vector.load %arg2[%c1_7, %c0_8, %c0_9] : memref<4x4x1xf32, #tpu.memory_space<vmem>>, vector<1x4x1xf32>
    %10 = vector.shape_cast %9 : vector<1x4x1xf32> to vector<4x1xf32>
    %11 = vector.broadcast %8 : vector<1x256xf32> to vector<4x256xf32>
    %12 = vector.broadcast %10 : vector<4x1xf32> to vector<4x256xf32>
    %13 = arith.mulf %11, %12 : vector<4x256xf32>
    %14 = arith.addf %6, %13 : vector<4x256xf32>
    %c0_10 = arith.constant 0 : index
    %c2 = arith.constant 2 : index
    %c0_11 = arith.constant 0 : index
    %15 = vector.load %arg1[%c0_10, %c2, %c0_11] : memref<1x4x256xf32, #tpu.memory_space<vmem>>, vector<1x1x256xf32>
    %16 = vector.shape_cast %15 : vector<1x1x256xf32> to vector<1x256xf32>
    %c2_12 = arith.constant 2 : index
    %c0_13 = arith.constant 0 : index
    %c0_14 = arith.constant 0 : index
    %17 = vector.load %arg2[%c2_12, %c0_13, %c0_14] : memref<4x4x1xf32, #tpu.memory_space<vmem>>, vector<1x4x1xf32>
    %18 = vector.shape_cast %17 : vector<1x4x1xf32> to vector<4x1xf32>
    %19 = vector.broadcast %16 : vector<1x256xf32> to vector<4x256xf32>
    %20 = vector.broadcast %18 : vector<4x1xf32> to vector<4x256xf32>
    %21 = arith.mulf %19, %20 : vector<4x256xf32>
    %22 = arith.addf %14, %21 : vector<4x256xf32>
    %c0_15 = arith.constant 0 : index
    %c3 = arith.constant 3 : index
    %c0_16 = arith.constant 0 : index
    %23 = vector.load %arg1[%c0_15, %c3, %c0_16] : memref<1x4x256xf32, #tpu.memory_space<vmem>>, vector<1x1x256xf32>
    %24 = vector.shape_cast %23 : vector<1x1x256xf32> to vector<1x256xf32>
    %c3_17 = arith.constant 3 : index
    %c0_18 = arith.constant 0 : index
    %c0_19 = arith.constant 0 : index
    %25 = vector.load %arg2[%c3_17, %c0_18, %c0_19] : memref<4x4x1xf32, #tpu.memory_space<vmem>>, vector<1x4x1xf32>
    %26 = vector.shape_cast %25 : vector<1x4x1xf32> to vector<4x1xf32>
    %27 = vector.broadcast %24 : vector<1x256xf32> to vector<4x256xf32>
    %28 = vector.broadcast %26 : vector<4x1xf32> to vector<4x256xf32>
    %29 = arith.mulf %27, %28 : vector<4x256xf32>
    %30 = arith.addf %22, %29 : vector<4x256xf32>
    %c0_20 = arith.constant 0 : index
    %c0_21 = arith.constant 0 : index
    %31 = vector.load %arg3[%c0_20, %c0_21] : memref<4x1xf32, #tpu.memory_space<vmem>>, vector<4x1xf32>
    %32 = vector.broadcast %31 : vector<4x1xf32> to vector<4x256xf32>
    %33 = arith.addf %30, %32 : vector<4x256xf32>
    %cst = arith.constant 0.000000e+00 : f32
    %34 = vector.broadcast %cst : f32 to vector<4x256xf32>
    %35 = arith.maximumf %33, %34 : vector<4x256xf32>
    %c0_22 = arith.constant 0 : index
    %c0_23 = arith.constant 0 : index
    %c0_24 = arith.constant 0 : index
    %36 = vector.load %arg7[%c0_22, %c0_23, %c0_24] : memref<1x8x256xf32, #tpu.memory_space<vmem>>, vector<1x4x256xf32>
    %37 = vector.shape_cast %36 : vector<1x4x256xf32> to vector<4x256xf32>
    %38 = vector.shape_cast %35 : vector<4x256xf32> to vector<1x4x256xf32>
    tpu.vector_store %arg7[%c0_22, %c0_23, %c0_24], %38 {strides = array<i32>} : memref<1x8x256xf32, #tpu.memory_space<vmem>>, vector<1x4x256xf32>,
    %c4 = arith.constant 4 : index
    %c0_25 = arith.constant 0 : index
    %c0_26 = arith.constant 0 : index
    %39 = vector.load %arg4[%c4, %c0_25, %c0_26] : memref<9x4x1xf32, #tpu.memory_space<vmem>>, vector<1x4x1xf32>
    %40 = vector.shape_cast %39 : vector<1x4x1xf32> to vector<4x1xf32>
    %41 = vector.broadcast %40 : vector<4x1xf32> to vector<4x256xf32>
    %42 = arith.mulf %35, %41 : vector<4x256xf32>
    %c17_i32 = arith.constant 17 : i32
    %43 = tpu.dynamic_rotate %35 by %c17_i32 dim 1 : vector<4x256xf32>, i32 -> vector<4x256xf32>
    %c0_27 = arith.constant 0 : index
    %c0_28 = arith.constant 0 : index
    %44 = vector.load %arg6[%c0_27, %c0_28] : memref<9x256xf32, #tpu.memory_space<vmem>>, vector<1x256xf32>
    %cst_29 = arith.constant 5.000000e-01 : f32
    %45 = vector.broadcast %cst_29 : f32 to vector<1x256xf32>
    %46 = arith.cmpf ogt, %44, %45 : vector<1x256xf32>
    %cst_30 = arith.constant 0.000000e+00 : f32
    %47 = vector.shape_cast %46 : vector<1x256xi1> to vector<1x256xi1>
    %48 = vector.broadcast %47 : vector<1x256xi1> to vector<4x256xi1>
    %49 = vector.broadcast %cst_30 : f32 to vector<4x256xf32>
    %50 = arith.select %48, %43, %49 : vector<4x256xi1>, vector<4x256xf32>
    %c0_31 = arith.constant 0 : index
    %c0_32 = arith.constant 0 : index
    %c0_33 = arith.constant 0 : index
    %51 = vector.load %arg4[%c0_31, %c0_32, %c0_33] : memref<9x4x1xf32, #tpu.memory_space<vmem>>, vector<1x4x1xf32>
    %52 = vector.shape_cast %51 : vector<1x4x1xf32> to vector<4x1xf32>
    %53 = vector.broadcast %52 : vector<4x1xf32> to vector<4x256xf32>
    %54 = arith.mulf %50, %53 : vector<4x256xf32>
    %55 = arith.addf %42, %54 : vector<4x256xf32>
    %c16_i32 = arith.constant 16 : i32
    %56 = tpu.dynamic_rotate %35 by %c16_i32 dim 1 : vector<4x256xf32>, i32 -> vector<4x256xf32>
    %c1_34 = arith.constant 1 : index
    %c0_35 = arith.constant 0 : index
    %57 = vector.load %arg6[%c1_34, %c0_35] : memref<9x256xf32, #tpu.memory_space<vmem>>, vector<1x256xf32>
    %cst_36 = arith.constant 5.000000e-01 : f32
    %58 = vector.broadcast %cst_36 : f32 to vector<1x256xf32>
    %59 = arith.cmpf ogt, %57, %58 : vector<1x256xf32>
    %cst_37 = arith.constant 0.000000e+00 : f32
    %60 = vector.shape_cast %59 : vector<1x256xi1> to vector<1x256xi1>
    %61 = vector.broadcast %60 : vector<1x256xi1> to vector<4x256xi1>
    %62 = vector.broadcast %cst_37 : f32 to vector<4x256xf32>
    %63 = arith.select %61, %56, %62 : vector<4x256xi1>, vector<4x256xf32>
    %c1_38 = arith.constant 1 : index
    %c0_39 = arith.constant 0 : index
    %c0_40 = arith.constant 0 : index
    %64 = vector.load %arg4[%c1_38, %c0_39, %c0_40] : memref<9x4x1xf32, #tpu.memory_space<vmem>>, vector<1x4x1xf32>
    %65 = vector.shape_cast %64 : vector<1x4x1xf32> to vector<4x1xf32>
    %66 = vector.broadcast %65 : vector<4x1xf32> to vector<4x256xf32>
    %67 = arith.mulf %63, %66 : vector<4x256xf32>
    %68 = arith.addf %55, %67 : vector<4x256xf32>
    %c15_i32 = arith.constant 15 : i32
    %69 = tpu.dynamic_rotate %35 by %c15_i32 dim 1 : vector<4x256xf32>, i32 -> vector<4x256xf32>
    %c2_41 = arith.constant 2 : index
    %c0_42 = arith.constant 0 : index
    %70 = vector.load %arg6[%c2_41, %c0_42] : memref<9x256xf32, #tpu.memory_space<vmem>>, vector<1x256xf32>
    %cst_43 = arith.constant 5.000000e-01 : f32
    %71 = vector.broadcast %cst_43 : f32 to vector<1x256xf32>
    %72 = arith.cmpf ogt, %70, %71 : vector<1x256xf32>
    %cst_44 = arith.constant 0.000000e+00 : f32
    %73 = vector.shape_cast %72 : vector<1x256xi1> to vector<1x256xi1>
    %74 = vector.broadcast %73 : vector<1x256xi1> to vector<4x256xi1>
    %75 = vector.broadcast %cst_44 : f32 to vector<4x256xf32>
    %76 = arith.select %74, %69, %75 : vector<4x256xi1>, vector<4x256xf32>
    %c2_45 = arith.constant 2 : index
    %c0_46 = arith.constant 0 : index
    %c0_47 = arith.constant 0 : index
    %77 = vector.load %arg4[%c2_45, %c0_46, %c0_47] : memref<9x4x1xf32, #tpu.memory_space<vmem>>, vector<1x4x1xf32>
    %78 = vector.shape_cast %77 : vector<1x4x1xf32> to vector<4x1xf32>
    %79 = vector.broadcast %78 : vector<4x1xf32> to vector<4x256xf32>
    %80 = arith.mulf %76, %79 : vector<4x256xf32>
    %81 = arith.addf %68, %80 : vector<4x256xf32>
    %c1_i32 = arith.constant 1 : i32
    %82 = tpu.dynamic_rotate %35 by %c1_i32 dim 1 : vector<4x256xf32>, i32 -> vector<4x256xf32>
    %c3_48 = arith.constant 3 : index
    %c0_49 = arith.constant 0 : index
    %83 = vector.load %arg6[%c3_48, %c0_49] : memref<9x256xf32, #tpu.memory_space<vmem>>, vector<1x256xf32>
    %cst_50 = arith.constant 5.000000e-01 : f32
    %84 = vector.broadcast %cst_50 : f32 to vector<1x256xf32>
    %85 = arith.cmpf ogt, %83, %84 : vector<1x256xf32>
    %cst_51 = arith.constant 0.000000e+00 : f32
    %86 = vector.shape_cast %85 : vector<1x256xi1> to vector<1x256xi1>
    %87 = vector.broadcast %86 : vector<1x256xi1> to vector<4x256xi1>
    %88 = vector.broadcast %cst_51 : f32 to vector<4x256xf32>
    %89 = arith.select %87, %82, %88 : vector<4x256xi1>, vector<4x256xf32>
    %c3_52 = arith.constant 3 : index
    %c0_53 = arith.constant 0 : index
    %c0_54 = arith.constant 0 : index
    %90 = vector.load %arg4[%c3_52, %c0_53, %c0_54] : memref<9x4x1xf32, #tpu.memory_space<vmem>>, vector<1x4x1xf32>
    %91 = vector.shape_cast %90 : vector<1x4x1xf32> to vector<4x1xf32>
    %92 = vector.broadcast %91 : vector<4x1xf32> to vector<4x256xf32>
    %93 = arith.mulf %89, %92 : vector<4x256xf32>
    %94 = arith.addf %81, %93 : vector<4x256xf32>
    %c255_i32 = arith.constant 255 : i32
    %95 = tpu.dynamic_rotate %35 by %c255_i32 dim 1 : vector<4x256xf32>, i32 -> vector<4x256xf32>
    %c5 = arith.constant 5 : index
    %c0_55 = arith.constant 0 : index
    %96 = vector.load %arg6[%c5, %c0_55] : memref<9x256xf32, #tpu.memory_space<vmem>>, vector<1x256xf32>
    %cst_56 = arith.constant 5.000000e-01 : f32
    %97 = vector.broadcast %cst_56 : f32 to vector<1x256xf32>
    %98 = arith.cmpf ogt, %96, %97 : vector<1x256xf32>
    %cst_57 = arith.constant 0.000000e+00 : f32
    %99 = vector.shape_cast %98 : vector<1x256xi1> to vector<1x256xi1>
    %100 = vector.broadcast %99 : vector<1x256xi1> to vector<4x256xi1>
    %101 = vector.broadcast %cst_57 : f32 to vector<4x256xf32>
    %102 = arith.select %100, %95, %101 : vector<4x256xi1>, vector<4x256xf32>
    %c5_58 = arith.constant 5 : index
    %c0_59 = arith.constant 0 : index
    %c0_60 = arith.constant 0 : index
    %103 = vector.load %arg4[%c5_58, %c0_59, %c0_60] : memref<9x4x1xf32, #tpu.memory_space<vmem>>, vector<1x4x1xf32>
    %104 = vector.shape_cast %103 : vector<1x4x1xf32> to vector<4x1xf32>
    %105 = vector.broadcast %104 : vector<4x1xf32> to vector<4x256xf32>
    %106 = arith.mulf %102, %105 : vector<4x256xf32>
    %107 = arith.addf %94, %106 : vector<4x256xf32>
    %c241_i32 = arith.constant 241 : i32
    %108 = tpu.dynamic_rotate %35 by %c241_i32 dim 1 : vector<4x256xf32>, i32 -> vector<4x256xf32>
    %c6 = arith.constant 6 : index
    %c0_61 = arith.constant 0 : index
    %109 = vector.load %arg6[%c6, %c0_61] : memref<9x256xf32, #tpu.memory_space<vmem>>, vector<1x256xf32>
    %cst_62 = arith.constant 5.000000e-01 : f32
    %110 = vector.broadcast %cst_62 : f32 to vector<1x256xf32>
    %111 = arith.cmpf ogt, %109, %110 : vector<1x256xf32>
    %cst_63 = arith.constant 0.000000e+00 : f32
    %112 = vector.shape_cast %111 : vector<1x256xi1> to vector<1x256xi1>
    %113 = vector.broadcast %112 : vector<1x256xi1> to vector<4x256xi1>
    %114 = vector.broadcast %cst_63 : f32 to vector<4x256xf32>
    %115 = arith.select %113, %108, %114 : vector<4x256xi1>, vector<4x256xf32>
    %c6_64 = arith.constant 6 : index
    %c0_65 = arith.constant 0 : index
    %c0_66 = arith.constant 0 : index
    %116 = vector.load %arg4[%c6_64, %c0_65, %c0_66] : memref<9x4x1xf32, #tpu.memory_space<vmem>>, vector<1x4x1xf32>
    %117 = vector.shape_cast %116 : vector<1x4x1xf32> to vector<4x1xf32>
    %118 = vector.broadcast %117 : vector<4x1xf32> to vector<4x256xf32>
    %119 = arith.mulf %115, %118 : vector<4x256xf32>
    %120 = arith.addf %107, %119 : vector<4x256xf32>
    %c240_i32 = arith.constant 240 : i32
    %121 = tpu.dynamic_rotate %35 by %c240_i32 dim 1 : vector<4x256xf32>, i32 -> vector<4x256xf32>
    %c7 = arith.constant 7 : index
    %c0_67 = arith.constant 0 : index
    %122 = vector.load %arg6[%c7, %c0_67] : memref<9x256xf32, #tpu.memory_space<vmem>>, vector<1x256xf32>
    %cst_68 = arith.constant 5.000000e-01 : f32
    %123 = vector.broadcast %cst_68 : f32 to vector<1x256xf32>
    %124 = arith.cmpf ogt, %122, %123 : vector<1x256xf32>
    %cst_69 = arith.constant 0.000000e+00 : f32
    %125 = vector.shape_cast %124 : vector<1x256xi1> to vector<1x256xi1>
    %126 = vector.broadcast %125 : vector<1x256xi1> to vector<4x256xi1>
    %127 = vector.broadcast %cst_69 : f32 to vector<4x256xf32>
    %128 = arith.select %126, %121, %127 : vector<4x256xi1>, vector<4x256xf32>
    %c7_70 = arith.constant 7 : index
    %c0_71 = arith.constant 0 : index
    %c0_72 = arith.constant 0 : index
    %129 = vector.load %arg4[%c7_70, %c0_71, %c0_72] : memref<9x4x1xf32, #tpu.memory_space<vmem>>, vector<1x4x1xf32>
    %130 = vector.shape_cast %129 : vector<1x4x1xf32> to vector<4x1xf32>
    %131 = vector.broadcast %130 : vector<4x1xf32> to vector<4x256xf32>
    %132 = arith.mulf %128, %131 : vector<4x256xf32>
    %133 = arith.addf %120, %132 : vector<4x256xf32>
    %c239_i32 = arith.constant 239 : i32
    %134 = tpu.dynamic_rotate %35 by %c239_i32 dim 1 : vector<4x256xf32>, i32 -> vector<4x256xf32>
    %c8 = arith.constant 8 : index
    %c0_73 = arith.constant 0 : index
    %135 = vector.load %arg6[%c8, %c0_73] : memref<9x256xf32, #tpu.memory_space<vmem>>, vector<1x256xf32>
    %cst_74 = arith.constant 5.000000e-01 : f32
    %136 = vector.broadcast %cst_74 : f32 to vector<1x256xf32>
    %137 = arith.cmpf ogt, %135, %136 : vector<1x256xf32>
    %cst_75 = arith.constant 0.000000e+00 : f32
    %138 = vector.shape_cast %137 : vector<1x256xi1> to vector<1x256xi1>
    %139 = vector.broadcast %138 : vector<1x256xi1> to vector<4x256xi1>
    %140 = vector.broadcast %cst_75 : f32 to vector<4x256xf32>
    %141 = arith.select %139, %134, %140 : vector<4x256xi1>, vector<4x256xf32>
    %c8_76 = arith.constant 8 : index
    %c0_77 = arith.constant 0 : index
    %c0_78 = arith.constant 0 : index
    %142 = vector.load %arg4[%c8_76, %c0_77, %c0_78] : memref<9x4x1xf32, #tpu.memory_space<vmem>>, vector<1x4x1xf32>
    %143 = vector.shape_cast %142 : vector<1x4x1xf32> to vector<4x1xf32>
    %144 = vector.broadcast %143 : vector<4x1xf32> to vector<4x256xf32>
    %145 = arith.mulf %141, %144 : vector<4x256xf32>
    %146 = arith.addf %133, %145 : vector<4x256xf32>
    %c0_79 = arith.constant 0 : index
    %c0_80 = arith.constant 0 : index
    %147 = vector.load %arg5[%c0_79, %c0_80] : memref<4x1xf32, #tpu.memory_space<vmem>>, vector<4x1xf32>
    %148 = vector.broadcast %147 : vector<4x1xf32> to vector<4x256xf32>
    %149 = arith.addf %146, %148 : vector<4x256xf32>
    %cst_81 = arith.constant 0.000000e+00 : f32
    %150 = vector.broadcast %cst_81 : f32 to vector<4x256xf32>
    %151 = arith.maximumf %149, %150 : vector<4x256xf32>
    %c0_82 = arith.constant 0 : index
    %c4_83 = arith.constant 4 : index
    %c0_84 = arith.constant 0 : index
    %152 = vector.load %arg7[%c0_82, %c4_83, %c0_84] : memref<1x8x256xf32, #tpu.memory_space<vmem>>, vector<1x4x256xf32>
    %153 = vector.shape_cast %152 : vector<1x4x256xf32> to vector<4x256xf32>
    %154 = vector.shape_cast %151 : vector<4x256xf32> to vector<1x4x256xf32>
    tpu.vector_store %arg7[%c0_82, %c4_83, %c0_84], %154 {strides = array<i32>} : memref<1x8x256xf32, #tpu.memory_space<vmem>>, vector<1x4x256xf32>,
    return
  }
  func.func @transform_0(%arg0: i32) -> (i32, i32, i32) {
    %c0_i32 = arith.constant 0 : i32
    %c0_i32_0 = arith.constant 0 : i32
    %c0_i32_1 = arith.constant 0 : i32
    return %arg0, %c0_i32, %c0_i32_0 : i32, i32, i32
  }
  func.func @transform_1(%arg0: i32) -> (i32, i32, i32) {
    %c0_i32 = arith.constant 0 : i32
    %c0_i32_0 = arith.constant 0 : i32
    %c0_i32_1 = arith.constant 0 : i32
    %c0_i32_2 = arith.constant 0 : i32
    return %c0_i32, %c0_i32_0, %c0_i32_1 : i32, i32, i32
  }
  func.func @transform_2(%arg0: i32) -> (i32, i32) {
    %c0_i32 = arith.constant 0 : i32
    %c0_i32_0 = arith.constant 0 : i32
    %c0_i32_1 = arith.constant 0 : i32
    return %c0_i32, %c0_i32_0 : i32, i32
  }
  func.func @transform_3(%arg0: i32) -> (i32, i32, i32) {
    %c0_i32 = arith.constant 0 : i32
    %c0_i32_0 = arith.constant 0 : i32
    %c0_i32_1 = arith.constant 0 : i32
    %c0_i32_2 = arith.constant 0 : i32
    return %c0_i32, %c0_i32_0, %c0_i32_1 : i32, i32, i32
  }
  func.func @transform_4(%arg0: i32) -> (i32, i32) {
    %c0_i32 = arith.constant 0 : i32
    %c0_i32_0 = arith.constant 0 : i32
    %c0_i32_1 = arith.constant 0 : i32
    return %c0_i32, %c0_i32_0 : i32, i32
  }
  func.func @transform_5(%arg0: i32) -> (i32, i32) {
    %c0_i32 = arith.constant 0 : i32
    %c0_i32_0 = arith.constant 0 : i32
    %c0_i32_1 = arith.constant 0 : i32
    return %c0_i32, %c0_i32_0 : i32, i32
  }
  func.func @transform_6(%arg0: i32) -> (i32, i32, i32) {
    %c0_i32 = arith.constant 0 : i32
    %c0_i32_0 = arith.constant 0 : i32
    %c0_i32_1 = arith.constant 0 : i32
    return %arg0, %c0_i32, %c0_i32_0 : i32, i32, i32
  }
}

</mosaic_0001>

<llo_original>
// kernel: tpu_custom_call.1
$region0: #{tpu_custom_call.1}
  #allocation0 [shape = 'u32[]', space=smem, size = 0x4, offset = 0x4, fixed_abs, tag = 'smem constant byte address 0x4 - core index']
  #allocation1 [shape = 'u32[144,128]{1,0:T(1,128)}', space=vmem, size = 0x12000, scoped, tag = 'internal scratch']
  %s0 = inlined_call_operand.vmem [shape: f32[2,4,256], index: 0, kind: input, shape index: {}]
  %s1 = inlined_call_operand.vmem [shape: f32[4,4,1], index: 1, kind: input, shape index: {}]
  %s2 = inlined_call_operand.vmem [shape: f32[4,1], index: 2, kind: input, shape index: {}]
  %s3 = inlined_call_operand.vmem [shape: f32[9,4,1], index: 3, kind: input, shape index: {}]
  %s4 = inlined_call_operand.vmem [shape: f32[4,1], index: 4, kind: input, shape index: {}]
  %s5 = inlined_call_operand.vmem [shape: f32[9,256], index: 5, kind: input, shape index: {}]
  %s6 = inlined_call_operand.hbm [shape: f32[2,8,256], index: 6, kind: output, shape index: {}]
  %s7 = sld [smem:[#allocation0]]
  $region57: #{tpu_custom_call.1} parent=0
    _
  %s9 = ssub.s32 1, %s7
  %s10 = scalar_select 0, %s9, %s7
  $region1: #{tpu_custom_call.1} parent=0
    #allocation2 [shape = 'u8[16384]{0}', space=vmem, size = 0x4000, scoped, tag = 'output window, operand 0']
    #allocation3 [shape = 's32[2]{0}', space=sflag, size = 0x8, scoped, tag = 'scoped memory for tpu_custom_call.1']
    %11 = vsyncpa [#allocation3], 0
    %s12 = scalar_lea.sflag [#allocation3], 1
    %13 = vsyncpa %s12, 0
    loop: start=0, step=1, limit=4
    $region2: #{tpu_custom_call.1} parent=1 // loop_pre_header
      _
    $region3: #{tpu_custom_call.1} parent=1 // loop_header
      %s15 = sphi 0, %s19
      %p16 = scmp.ge.s32.totalorder %s15, 4
      %s25 = sphi 0, %s27
      %s28 = sphi 0, %s25
      %s29 = sphi 0, %s28
      %s45 = sphi 0, %s29
      %s49 = sphi 0, %s49
      %s51 = sphi 0, %s49
      %s52 = sphi 0, %s51
      %s66 = sphi 0, %s52
      %s70 = sphi 0, %s70
      %s72 = sphi 0, %s70
      %s73 = sphi 0, %s72
      %s87 = sphi 0, %s73
      %s91 = sphi 0, %s91
      %s93 = sphi 0, %s91
      %s94 = sphi 0, %s93
      %s108 = sphi 0, %s94
      %s112 = sphi 0, %s112
      %s114 = sphi 0, %s112
      %s115 = sphi 0, %s114
      %s129 = sphi 0, %s115
      %s133 = sphi 0, %s133
      %s135 = sphi 0, %s133
      %s136 = sphi 0, %s135
      %s150 = sphi 0, %s136
      %s156 = sphi 0, %s158
      %s159 = sphi 0, %s156
      %s160 = sphi 0, %s159
      %s176 = sphi 0, %s160
    $region4: #{tpu_custom_call.1} parent=1 // loop_header_branch
      %18 = sbr.rel (%p16) target = $region8
    $region5: #{tpu_custom_call.1} parent=1 // loop_body
      %s20 = ssub.s32 %s15, 1
      %s21 = ssub.s32 %s15, 2
      %s22 = sadd.s32 %s15, 1
      %s23 = ssub.s32 %s15, %s22
      %p24 = scmp.eq.s32.totalorder %s23, 0
      %s26 = sadd.s32 %s25, 1
      %s27 = scalar_select %p24, %s25, %s26
      %p30 = pneg %p24
      %p31 = scmp.eq.s32.totalorder %s15, 1
      %p32 = por %p30, %p31
      %p33 = scmp.ne.s32.totalorder %s25, %s28
      %p34 = scmp.eq.s32.totalorder %s15, 0
      %p35 = por %p33, %p34
      %p36 = scmp.ne.s32.totalorder %s25, %s28
      %p37 = scmp.eq.s32.totalorder %s20, 1
      %p38 = por %p36, %p37
      %p39 = scmp.ne.s32.totalorder %s28, %s29
      %p40 = scmp.eq.s32.totalorder %s20, 0
      %p41 = por %p39, %p40
      %p42 = scmp.ne.s32.totalorder %s28, %s29
      %p43 = scmp.eq.s32.totalorder %s21, 1
      %p44 = por %p42, %p43
      %p46 = scmp.ne.s32.totalorder %s29, %s45
      %p47 = scmp.eq.s32.totalorder %s21, 0
      %p48 = por %p46, %p47
      %s50 = sadd.s32 %s49, 1
      %p53 = scmp.eq.s32.totalorder %s15, 1
      %p54 = scmp.ne.s32.totalorder %s49, %s51
      %p55 = scmp.eq.s32.totalorder %s15, 0
      %p56 = por %p54, %p55
      %p57 = scmp.ne.s32.totalorder %s49, %s51
      %p58 = scmp.eq.s32.totalorder %s20, 1
      %p59 = por %p57, %p58
      %p60 = scmp.ne.s32.totalorder %s51, %s52
      %p61 = scmp.eq.s32.totalorder %s20, 0
      %p62 = por %p60, %p61
      %p63 = scmp.ne.s32.totalorder %s51, %s52
      %p64 = scmp.eq.s32.totalorder %s21, 1
      %p65 = por %p63, %p64
      %p67 = scmp.ne.s32.totalorder %s52, %s66
      %p68 = scmp.eq.s32.totalorder %s21, 0
      %p69 = por %p67, %p68
      %s71 = sadd.s32 %s70, 1
      %p74 = scmp.eq.s32.totalorder %s15, 1
      %p75 = scmp.ne.s32.totalorder %s70, %s72
      %p76 = scmp.eq.s32.totalorder %s15, 0
      %p77 = por %p75, %p76
      %p78 = scmp.ne.s32.totalorder %s70, %s72
      %p79 = scmp.eq.s32.totalorder %s20, 1
      %p80 = por %p78, %p79
      %p81 = scmp.ne.s32.totalorder %s72, %s73
      %p82 = scmp.eq.s32.totalorder %s20, 0
      %p83 = por %p81, %p82
      %p84 = scmp.ne.s32.totalorder %s72, %s73
      %p85 = scmp.eq.s32.totalorder %s21, 1
      %p86 = por %p84, %p85
      %p88 = scmp.ne.s32.totalorder %s73, %s87
      %p89 = scmp.eq.s32.totalorder %s21, 0
      %p90 = por %p88, %p89
      %s92 = sadd.s32 %s91, 1
      %p95 = scmp.eq.s32.totalorder %s15, 1
      %p96 = scmp.ne.s32.totalorder %s91, %s93
      %p97 = scmp.eq.s32.totalorder %s15, 0
      %p98 = por %p96, %p97
      %p99 = scmp.ne.s32.totalorder %s91, %s93
      %p100 = scmp.eq.s32.totalorder %s20, 1
      %p101 = por %p99, %p100
      %p102 = scmp.ne.s32.totalorder %s93, %s94
      %p103 = scmp.eq.s32.totalorder %s20, 0
      %p104 = por %p102, %p103
      %p105 = scmp.ne.s32.totalorder %s93, %s94
      %p106 = scmp.eq.s32.totalorder %s21, 1
      %p107 = por %p105, %p106
      %p109 = scmp.ne.s32.totalorder %s94, %s108
      %p110 = scmp.eq.s32.totalorder %s21, 0
      %p111 = por %p109, %p110
      %s113 = sadd.s32 %s112, 1
      %p116 = scmp.eq.s32.totalorder %s15, 1
      %p117 = scmp.ne.s32.totalorder %s112, %s114
      %p118 = scmp.eq.s32.totalorder %s15, 0
      %p119 = por %p117, %p118
      %p120 = scmp.ne.s32.totalorder %s112, %s114
      %p121 = scmp.eq.s32.totalorder %s20, 1
      %p122 = por %p120, %p121
      %p123 = scmp.ne.s32.totalorder %s114, %s115
      %p124 = scmp.eq.s32.totalorder %s20, 0
      %p125 = por %p123, %p124
      %p126 = scmp.ne.s32.totalorder %s114, %s115
      %p127 = scmp.eq.s32.totalorder %s21, 1
      %p128 = por %p126, %p127
      %p130 = scmp.ne.s32.totalorder %s115, %s129
      %p131 = scmp.eq.s32.totalorder %s21, 0
      %p132 = por %p130, %p131
      %s134 = sadd.s32 %s133, 1
      %p137 = scmp.eq.s32.totalorder %s15, 1
      %p138 = scmp.ne.s32.totalorder %s133, %s135
      %p139 = scmp.eq.s32.totalorder %s15, 0
      %p140 = por %p138, %p139
      %p141 = scmp.ne.s32.totalorder %s133, %s135
      %p142 = scmp.eq.s32.totalorder %s20, 1
      %p143 = por %p141, %p142
      %p144 = scmp.ne.s32.totalorder %s135, %s136
      %p145 = scmp.eq.s32.totalorder %s20, 0
      %p146 = por %p144, %p145
      %p147 = scmp.ne.s32.totalorder %s135, %s136
      %p148 = scmp.eq.s32.totalorder %s21, 1
      %p149 = por %p147, %p148
      %p151 = scmp.ne.s32.totalorder %s136, %s150
      %p152 = scmp.eq.s32.totalorder %s21, 0
      %p153 = por %p151, %p152
      %s154 = ssub.s32 %s15, %s22
      %p155 = scmp.eq.s32.totalorder %s154, 0
      %s157 = sadd.s32 %s156, 1
      %s158 = scalar_select %p155, %s156, %s157
      %p161 = pneg %p155
      %p162 = scmp.eq.s32.totalorder %s15, 1
      %p163 = por %p161, %p162
      %p164 = scmp.ne.s32.totalorder %s156, %s159
      %p165 = scmp.eq.s32.totalorder %s15, 0
      %p166 = por %p164, %p165
      %p167 = scmp.ne.s32.totalorder %s156, %s159
      %p168 = scmp.eq.s32.totalorder %s20, 1
      %p169 = por %p167, %p168
      %p170 = scmp.ne.s32.totalorder %s159, %s160
      %p171 = scmp.eq.s32.totalorder %s20, 0
      %p172 = por %p170, %p171
      %p173 = scmp.ne.s32.totalorder %s159, %s160
      %p174 = scmp.eq.s32.totalorder %s21, 1
      %p175 = por %p173, %p174
      %p177 = scmp.ne.s32.totalorder %s160, %s176
      %p178 = scmp.eq.s32.totalorder %s21, 0
      %p179 = por %p177, %p178
      %p180 = scmp.le.s32.totalorder 1, %s15
      %p181 = scmp.lt.s32.totalorder %s15, 3
      %p182 = pnand %p180, %p181
      %p183 = pneg %p182
      // Predicated region
      $region9: #{tpu_custom_call.1} parent=5 // pred_check
        _
      $region10: #{tpu_custom_call.1} parent=5 // pred_check_branch
        %185 = sbr.rel (%p182) target = $region12
      $region11: #{tpu_custom_call.1} parent=5 // pred_region
        %s186 = ssub.s32 %s15, 1
        // Predicated region
        $region13: #{tpu_custom_call.1} parent=11 // pred_check
          %p187 = pneg %p62
        $region14: #{tpu_custom_call.1} parent=11 // pred_check_branch
          %189 = sbr.rel (%p187) target = $region16
        $region15: #{tpu_custom_call.1} parent=11 // pred_region
          _
        $region16: #{tpu_custom_call.1} parent=11 // pred_fallthru
          _
        // Predicated region
        $region17: #{tpu_custom_call.1} parent=11 // pred_check
          %p190 = pneg %p83
        $region18: #{tpu_custom_call.1} parent=11 // pred_check_branch
          %192 = sbr.rel (%p190) target = $region20
        $region19: #{tpu_custom_call.1} parent=11 // pred_region
          _
        $region20: #{tpu_custom_call.1} parent=11 // pred_fallthru
          _
        // Predicated region
        $region21: #{tpu_custom_call.1} parent=11 // pred_check
          %p193 = pneg %p104
        $region22: #{tpu_custom_call.1} parent=11 // pred_check_branch
          %195 = sbr.rel (%p193) target = $region24
        $region23: #{tpu_custom_call.1} parent=11 // pred_region
          _
        $region24: #{tpu_custom_call.1} parent=11 // pred_fallthru
          _
        // Predicated region
        $region25: #{tpu_custom_call.1} parent=11 // pred_check
          %p196 = pneg %p125
        $region26: #{tpu_custom_call.1} parent=11 // pred_check_branch
          %198 = sbr.rel (%p196) target = $region28
        $region27: #{tpu_custom_call.1} parent=11 // pred_region
          _
        $region28: #{tpu_custom_call.1} parent=11 // pred_fallthru
          _
        // Predicated region
        $region29: #{tpu_custom_call.1} parent=11 // pred_check
          %p199 = pneg %p146
        $region30: #{tpu_custom_call.1} parent=11 // pred_check_branch
          %201 = sbr.rel (%p199) target = $region32
        $region31: #{tpu_custom_call.1} parent=11 // pred_region
          _
        $region32: #{tpu_custom_call.1} parent=11 // pred_fallthru
          _
      $region12: #{tpu_custom_call.1} parent=5 // pred_fallthru
        _
      %p202 = scmp.lt.s32.totalorder %s15, 2
      // Predicated region
      $region33: #{tpu_custom_call.1} parent=5 // pred_check
        %p203 = pneg %p202
      $region34: #{tpu_custom_call.1} parent=5 // pred_check_branch
        %205 = sbr.rel (%p203) target = $region36
      $region35: #{tpu_custom_call.1} parent=5 // pred_region
        // Predicated region
        $region37: #{tpu_custom_call.1} parent=35 // pred_check
          %p206 = pneg %p35
        $region38: #{tpu_custom_call.1} parent=35 // pred_check_branch
          %208 = sbr.rel (%p206) target = $region40
        $region39: #{tpu_custom_call.1} parent=35 // pred_region
          %p209 = scmp.lt.s32.totalorder %s15, 1
          %s210 = scalar_select %p209, %s15, 1
          %s211 = smul.addr %s210, 2
          %s212 = smul.addr %s211, 4
          %s213 = scalar_lea.vmem %s0, %s212
        $region40: #{tpu_custom_call.1} parent=35 // pred_fallthru
          _
      $region36: #{tpu_custom_call.1} parent=5 // pred_fallthru
        _
      %p214 = scmp.le.s32.totalorder 1, %s15
      %p215 = scmp.lt.s32.totalorder %s15, 3
      %p216 = pnand %p214, %p215
      %p217 = pneg %p216
      // Predicated region
      $region41: #{tpu_custom_call.1} parent=5 // pred_check
        _
      $region42: #{tpu_custom_call.1} parent=5 // pred_check_branch
        %219 = sbr.rel (%p216) target = $region44
      $region43: #{tpu_custom_call.1} parent=5 // pred_region
        %s220 = ssub.s32 %s15, 1
        %p221 = scmp.lt.s32.totalorder %s20, 1
        %s222 = scalar_select %p221, %s20, 1
        %s223 = smul.addr %s222, 2
        %s224 = smul.addr %s223, 4
        %s225 = scalar_lea.vmem %s0, %s224
        %p226 = pneg %p41
        %p227 = pneg %p38
        %p228 = pneg %p62
        %p229 = pneg %p59
        %p230 = pneg %p83
        %p231 = pneg %p80
        %p232 = pneg %p104
        %p233 = pneg %p101
        %p234 = pneg %p125
        %p235 = pneg %p122
        %p236 = pneg %p146
        %p237 = pneg %p143
        %p238 = pneg %p172
        %p239 = pneg %p169
        %s240 = sand.u32 %s159, 1
        %s241 = scalar_lea.sflag [#allocation3], %s240
        %s242 = sand.u32 %s159, 1
        %s243 = smul.addr %s242, 16
        %s244 = scalar_lea.vmem [#allocation2], %s243
        %p245 = scmp.lt.s32.totalorder %s20, 1
        %s246 = scalar_select %p245, %s20, 1
        %s247 = smul.addr %s246, 2
        %s248 = smul.addr %s247, 4
        %s249 = scalar_lea.vmem %s0, %s248
        %v250 = vld [vmem:[%s249] ss:$4 sm:$0x3]
        %v251 = vld [vmem:[%s1] sm:$0xf]
        %v253 = vlaneseq
        %v254 = vshrl.u32 %v253, 7
        %v255 = vsub.s32 0, %v254
        %v256 = vrot.slane %v250, %v255
        %v257 = vlaneseq
        %v258 = vshrl.u32 %v257, 7
        %v259 = vsub.s32 1, %v258
        %v260 = vrot.slane %v250, %v259
        %264 = vset.pattern.permute.xlu0 0
        %265 = vperm.xlu0 %264, %v251
        %v266 = vpop.permute.xlu0 %265
        %v268 = vmul.f32 %v256, %v266
        %v269 = vmul.f32 %v260, %v266
        %s270 = scalar_lea.vmem %s249, 1
        %v271 = vld [vmem:[%s270] ss:$4 sm:$0x3]
        %s272 = scalar_lea.vmem %s1, 4
        %v273 = vld [vmem:[%s272] sm:$0xf]
        %v275 = vlaneseq
        %v276 = vshrl.u32 %v275, 7
        %v277 = vsub.s32 0, %v276
        %v278 = vrot.slane %v271, %v277
        %v279 = vlaneseq
        %v280 = vshrl.u32 %v279, 7
        %v281 = vsub.s32 1, %v280
        %v282 = vrot.slane %v271, %v281
        %286 = vset.pattern.permute.xlu0 0
        %287 = vperm.xlu0 %286, %v273
        %v288 = vpop.permute.xlu0 %287
        %v290 = vmul.f32 %v278, %v288
        %v291 = vmul.f32 %v282, %v288
        %v292 = vadd.f32 %v268, %v290
        %v293 = vadd.f32 %v269, %v291
        %s294 = scalar_lea.vmem %s249, 2
        %v295 = vld [vmem:[%s294] ss:$4 sm:$0x3]
        %s296 = scalar_lea.vmem %s1, 8
        %v297 = vld [vmem:[%s296] sm:$0xf]
        %v299 = vlaneseq
        %v300 = vshrl.u32 %v299, 7
        %v301 = vsub.s32 0, %v300
        %v302 = vrot.slane %v295, %v301
        %v303 = vlaneseq
        %v304 = vshrl.u32 %v303, 7
        %v305 = vsub.s32 1, %v304
        %v306 = vrot.slane %v295, %v305
        %310 = vset.pattern.permute.xlu0 0
        %311 = vperm.xlu0 %310, %v297
        %v312 = vpop.permute.xlu0 %311
        %v314 = vmul.f32 %v302, %v312
        %v315 = vmul.f32 %v306, %v312
        %v316 = vadd.f32 %v292, %v314
        %v317 = vadd.f32 %v293, %v315
        %s318 = scalar_lea.vmem %s249, 3
        %v319 = vld [vmem:[%s318] ss:$4 sm:$0x3]
        %s320 = scalar_lea.vmem %s1, 12
        %v321 = vld [vmem:[%s320] sm:$0xf]
        %v323 = vlaneseq
        %v324 = vshrl.u32 %v323, 7
        %v325 = vsub.s32 0, %v324
        %v326 = vrot.slane %v319, %v325
        %v327 = vlaneseq
        %v328 = vshrl.u32 %v327, 7
        %v329 = vsub.s32 1, %v328
        %v330 = vrot.slane %v319, %v329
        %334 = vset.pattern.permute.xlu0 0
        %335 = vperm.xlu0 %334, %v321
        %v336 = vpop.permute.xlu0 %335
        %v338 = vmul.f32 %v326, %v336
        %v339 = vmul.f32 %v330, %v336
        %v340 = vadd.f32 %v316, %v338
        %v341 = vadd.f32 %v317, %v339
        %v342 = vld [vmem:[%s2] sm:$0xf]
        %344 = vset.pattern.permute.xlu0 0
        %345 = vperm.xlu0 %344, %v342
        %v346 = vpop.permute.xlu0 %345
        %v348 = vadd.f32 %v340, %v346
        %v349 = vadd.f32 %v341, %v346
        %v350 = vmax.f32 %v348, 0.0
        %v351 = vmax.f32 %v349, 0.0
        %352 = vst [vmem:[%s244] sm:$0xf] %v350
        %353 = vst [vmem:[%s244 + $0x8] sm:$0xf] %v351
        %s354 = scalar_lea.vmem %s3, 16
        %v355 = vld [vmem:[%s354] sm:$0xf]
        %357 = vset.pattern.permute.xlu0 0
        %358 = vperm.xlu0 %357, %v355
        %v359 = vpop.permute.xlu0 %358
        %v361 = vmul.f32 %v350, %v359
        %v362 = vmul.f32 %v351, %v359
        %363 = vrot.lane.b32.xlu0 %v350, 17
        %v364 = vpop.permute.xlu0 %363
        %365 = vrot.lane.b32.xlu0 %v351, 17
        %v366 = vpop.permute.xlu0 %365
        %v367 = vlaneseq
        %v368 = vand.u32 %v367, 127
        %vm369 = vcmp.lt.s32.totalorder %v368, 17
        %v370 = vsel %vm369, %v364, %v366
        %v371 = vsel %vm369, %v366, %v364
        %v372 = vld [vmem:[%s5] ss:$8 sm:$0x3]
        %vm373 = vcmp.gt.f32.partialorder %v372, 0.5
        %v374 = vsel %vm373, 1, 0
        %v375 = vlaneseq
        %v376 = vshrl.u32 %v375, 7
        %v377 = vsub.s32 0, %v376
        %v378 = vrot.slane %v374, %v377
        %v379 = vlaneseq
        %v380 = vshrl.u32 %v379, 7
        %v381 = vsub.s32 1, %v380
        %v382 = vrot.slane %v374, %v381
        %vm383 = vcmp.eq.s32.totalorder %v378, 1
        %vm384 = vcmp.eq.s32.totalorder %v382, 1
        %v385 = vsel %vm383, %v371, 0.0
        %v386 = vsel %vm384, %v370, 0.0
        %v387 = vld [vmem:[%s3] sm:$0xf]
        %389 = vset.pattern.permute.xlu0 0
        %390 = vperm.xlu0 %389, %v387
        %v391 = vpop.permute.xlu0 %390
        %v393 = vmul.f32 %v385, %v391
        %v394 = vmul.f32 %v386, %v391
        %v395 = vadd.f32 %v361, %v393
        %v396 = vadd.f32 %v362, %v394
        %397 = vrot.lane.b32.xlu0 %v350, 16
        %v398 = vpop.permute.xlu0 %397
        %399 = vrot.lane.b32.xlu0 %v351, 16
        %v400 = vpop.permute.xlu0 %399
        %vm401 = vcmp.lt.s32.totalorder %v368, 16
        %v402 = vsel %vm401, %v398, %v400
        %v403 = vsel %vm401, %v400, %v398
        %s404 = scalar_lea.vmem %s5, 1
        %v405 = vld [vmem:[%s404] ss:$8 sm:$0x3]
        %vm406 = vcmp.gt.f32.partialorder %v405, 0.5
        %v407 = vsel %vm406, 1, 0
        %v408 = vlaneseq
        %v409 = vshrl.u32 %v408, 7
        %v410 = vsub.s32 0, %v409
        %v411 = vrot.slane %v407, %v410
        %v412 = vlaneseq
        %v413 = vshrl.u32 %v412, 7
        %v414 = vsub.s32 1, %v413
        %v415 = vrot.slane %v407, %v414
        %vm416 = vcmp.eq.s32.totalorder %v411, 1
        %vm417 = vcmp.eq.s32.totalorder %v415, 1
        %v418 = vsel %vm416, %v403, 0.0
        %v419 = vsel %vm417, %v402, 0.0
        %s420 = scalar_lea.vmem %s3, 4
        %v421 = vld [vmem:[%s420] sm:$0xf]
        %423 = vset.pattern.permute.xlu0 0
        %424 = vperm.xlu0 %423, %v421
        %v425 = vpop.permute.xlu0 %424
        %v427 = vmul.f32 %v418, %v425
        %v428 = vmul.f32 %v419, %v425
        %v429 = vadd.f32 %v395, %v427
        %v430 = vadd.f32 %v396, %v428
        %431 = vrot.lane.b32.xlu0 %v350, 15
        %v432 = vpop.permute.xlu0 %431
        %433 = vrot.lane.b32.xlu0 %v351, 15
        %v434 = vpop.permute.xlu0 %433
        %vm435 = vcmp.lt.s32.totalorder %v368, 15
        %v436 = vsel %vm435, %v432, %v434
        %v437 = vsel %vm435, %v434, %v432
        %s438 = scalar_lea.vmem %s5, 2
        %v439 = vld [vmem:[%s438] ss:$8 sm:$0x3]
        %vm440 = vcmp.gt.f32.partialorder %v439, 0.5
        %v441 = vsel %vm440, 1, 0
        %v442 = vlaneseq
        %v443 = vshrl.u32 %v442, 7
        %v444 = vsub.s32 0, %v443
        %v445 = vrot.slane %v441, %v444
        %v446 = vlaneseq
        %v447 = vshrl.u32 %v446, 7
        %v448 = vsub.s32 1, %v447
        %v449 = vrot.slane %v441, %v448
        %vm450 = vcmp.eq.s32.totalorder %v445, 1
        %vm451 = vcmp.eq.s32.totalorder %v449, 1
        %v452 = vsel %vm450, %v437, 0.0
        %v453 = vsel %vm451, %v436, 0.0
        %s454 = scalar_lea.vmem %s3, 8
        %v455 = vld [vmem:[%s454] sm:$0xf]
        %457 = vset.pattern.permute.xlu0 0
        %458 = vperm.xlu0 %457, %v455
        %v459 = vpop.permute.xlu0 %458
        %v461 = vmul.f32 %v452, %v459
        %v462 = vmul.f32 %v453, %v459
        %v463 = vadd.f32 %v429, %v461
        %v464 = vadd.f32 %v430, %v462
        %465 = vrot.lane.b32.xlu0 %v350, 1
        %v466 = vpop.permute.xlu0 %465
        %467 = vrot.lane.b32.xlu0 %v351, 1
        %v468 = vpop.permute.xlu0 %467
        %vm469 = vcmp.lt.s32.totalorder %v368, 1
        %v470 = vsel %vm469, %v466, %v468
        %v471 = vsel %vm469, %v468, %v466
        %s472 = scalar_lea.vmem %s5, 3
        %v473 = vld [vmem:[%s472] ss:$8 sm:$0x3]
        %vm474 = vcmp.gt.f32.partialorder %v473, 0.5
        %v475 = vsel %vm474, 1, 0
        %v476 = vlaneseq
        %v477 = vshrl.u32 %v476, 7
        %v478 = vsub.s32 0, %v477
        %v479 = vrot.slane %v475, %v478
        %v480 = vlaneseq
        %v481 = vshrl.u32 %v480, 7
        %v482 = vsub.s32 1, %v481
        %v483 = vrot.slane %v475, %v482
        %vm484 = vcmp.eq.s32.totalorder %v479, 1
        %vm485 = vcmp.eq.s32.totalorder %v483, 1
        %v486 = vsel %vm484, %v471, 0.0
        %v487 = vsel %vm485, %v470, 0.0
        %s488 = scalar_lea.vmem %s3, 12
        %v489 = vld [vmem:[%s488] sm:$0xf]
        %491 = vset.pattern.permute.xlu0 0
        %492 = vperm.xlu0 %491, %v489
        %v493 = vpop.permute.xlu0 %492
        %v495 = vmul.f32 %v486, %v493
        %v496 = vmul.f32 %v487, %v493
        %v497 = vadd.f32 %v463, %v495
        %v498 = vadd.f32 %v464, %v496
        %499 = vrot.lane.b32.xlu0 %v350, 127
        %v500 = vpop.permute.xlu0 %499
        %501 = vrot.lane.b32.xlu0 %v351, 127
        %v502 = vpop.permute.xlu0 %501
        %vm503 = vcmp.lt.s32.totalorder %v368, 127
        %v504 = vsel %vm503, %v500, %v502
        %v505 = vsel %vm503, %v502, %v500
        %s506 = scalar_lea.vmem %s5, 5
        %v507 = vld [vmem:[%s506] ss:$8 sm:$0x3]
        %vm508 = vcmp.gt.f32.partialorder %v507, 0.5
        %v509 = vsel %vm508, 1, 0
        %v510 = vlaneseq
        %v511 = vshrl.u32 %v510, 7
        %v512 = vsub.s32 0, %v511
        %v513 = vrot.slane %v509, %v512
        %v514 = vlaneseq
        %v515 = vshrl.u32 %v514, 7
        %v516 = vsub.s32 1, %v515
        %v517 = vrot.slane %v509, %v516
        %vm518 = vcmp.eq.s32.totalorder %v513, 1
        %vm519 = vcmp.eq.s32.totalorder %v517, 1
        %v520 = vsel %vm518, %v504, 0.0
        %v521 = vsel %vm519, %v505, 0.0
        %s522 = scalar_lea.vmem %s3, 20
        %v523 = vld [vmem:[%s522] sm:$0xf]
        %525 = vset.pattern.permute.xlu0 0
        %526 = vperm.xlu0 %525, %v523
        %v527 = vpop.permute.xlu0 %526
        %v529 = vmul.f32 %v520, %v527
        %v530 = vmul.f32 %v521, %v527
        %v531 = vadd.f32 %v497, %v529
        %v532 = vadd.f32 %v498, %v530
        %533 = vrot.lane.b32.xlu0 %v350, 113
        %v534 = vpop.permute.xlu0 %533
        %535 = vrot.lane.b32.xlu0 %v351, 113
        %v536 = vpop.permute.xlu0 %535
        %vm537 = vcmp.lt.s32.totalorder %v368, 113
        %v538 = vsel %vm537, %v534, %v536
        %v539 = vsel %vm537, %v536, %v534
        %s540 = scalar_lea.vmem %s5, 6
        %v541 = vld [vmem:[%s540] ss:$8 sm:$0x3]
        %vm542 = vcmp.gt.f32.partialorder %v541, 0.5
        %v543 = vsel %vm542, 1, 0
        %v544 = vlaneseq
        %v545 = vshrl.u32 %v544, 7
        %v546 = vsub.s32 0, %v545
        %v547 = vrot.slane %v543, %v546
        %v548 = vlaneseq
        %v549 = vshrl.u32 %v548, 7
        %v550 = vsub.s32 1, %v549
        %v551 = vrot.slane %v543, %v550
        %vm552 = vcmp.eq.s32.totalorder %v547, 1
        %vm553 = vcmp.eq.s32.totalorder %v551, 1
        %v554 = vsel %vm552, %v538, 0.0
        %v555 = vsel %vm553, %v539, 0.0
        %s556 = scalar_lea.vmem %s3, 24
        %v557 = vld [vmem:[%s556] sm:$0xf]
        %559 = vset.pattern.permute.xlu0 0
        %560 = vperm.xlu0 %559, %v557
        %v561 = vpop.permute.xlu0 %560
        %v563 = vmul.f32 %v554, %v561
        %v564 = vmul.f32 %v555, %v561
        %v565 = vadd.f32 %v531, %v563
        %v566 = vadd.f32 %v532, %v564
        %567 = vrot.lane.b32.xlu0 %v350, 112
        %v568 = vpop.permute.xlu0 %567
        %569 = vrot.lane.b32.xlu0 %v351, 112
        %v570 = vpop.permute.xlu0 %569
        %vm571 = vcmp.lt.s32.totalorder %v368, 112
        %v572 = vsel %vm571, %v568, %v570
        %v573 = vsel %vm571, %v570, %v568
        %s574 = scalar_lea.vmem %s5, 7
        %v575 = vld [vmem:[%s574] ss:$8 sm:$0x3]
        %vm576 = vcmp.gt.f32.partialorder %v575, 0.5
        %v577 = vsel %vm576, 1, 0
        %v578 = vlaneseq
        %v579 = vshrl.u32 %v578, 7
        %v580 = vsub.s32 0, %v579
        %v581 = vrot.slane %v577, %v580
        %v582 = vlaneseq
        %v583 = vshrl.u32 %v582, 7
        %v584 = vsub.s32 1, %v583
        %v585 = vrot.slane %v577, %v584
        %vm586 = vcmp.eq.s32.totalorder %v581, 1
        %vm587 = vcmp.eq.s32.totalorder %v585, 1
        %v588 = vsel %vm586, %v572, 0.0
        %v589 = vsel %vm587, %v573, 0.0
        %s590 = scalar_lea.vmem %s3, 28
        %v591 = vld [vmem:[%s590] sm:$0xf]
        %593 = vset.pattern.permute.xlu0 0
        %594 = vperm.xlu0 %593, %v591
        %v595 = vpop.permute.xlu0 %594
        %v597 = vmul.f32 %v588, %v595
        %v598 = vmul.f32 %v589, %v595
        %v599 = vadd.f32 %v565, %v597
        %v600 = vadd.f32 %v566, %v598
        %601 = vrot.lane.b32.xlu0 %v350, 111
        %v602 = vpop.permute.xlu0 %601
        %603 = vrot.lane.b32.xlu0 %v351, 111
        %v604 = vpop.permute.xlu0 %603
        %vm605 = vcmp.lt.s32.totalorder %v368, 111
        %v606 = vsel %vm605, %v602, %v604
        %v607 = vsel %vm605, %v604, %v602
        %s608 = scalar_lea.vmem %s5, 16
        %v609 = vld [vmem:[%s608] ss:$8 sm:$0x3]
        %vm610 = vcmp.gt.f32.partialorder %v609, 0.5
        %v611 = vsel %vm610, 1, 0
        %v612 = vlaneseq
        %v613 = vshrl.u32 %v612, 7
        %v614 = vsub.s32 0, %v613
        %v615 = vrot.slane %v611, %v614
        %v616 = vlaneseq
        %v617 = vshrl.u32 %v616, 7
        %v618 = vsub.s32 1, %v617
        %v619 = vrot.slane %v611, %v618
        %vm620 = vcmp.eq.s32.totalorder %v615, 1
        %vm621 = vcmp.eq.s32.totalorder %v619, 1
        %v622 = vsel %vm620, %v606, 0.0
        %v623 = vsel %vm621, %v607, 0.0
        %s624 = scalar_lea.vmem %s3, 32
        %v625 = vld [vmem:[%s624] sm:$0xf]
        %627 = vset.pattern.permute.xlu0 0
        %628 = vperm.xlu0 %627, %v625
        %v629 = vpop.permute.xlu0 %628
        %v631 = vmul.f32 %v622, %v629
        %v632 = vmul.f32 %v623, %v629
        %v633 = vadd.f32 %v599, %v631
        %v634 = vadd.f32 %v600, %v632
        %v635 = vld [vmem:[%s4] sm:$0xf]
        %637 = vset.pattern.permute.xlu0 0
        %638 = vperm.xlu0 %637, %v635
        %v639 = vpop.permute.xlu0 %638
        %v641 = vadd.f32 %v633, %v639
        %v642 = vadd.f32 %v634, %v639
        %v643 = vmax.f32 %v641, 0.0
        %v644 = vmax.f32 %v642, 0.0
        %v647 = vrot.slane %v643, 4
        %v648 = vrot.slane %v644, 4
        %651 = vst [vmem:[%s244] sm:$0xf0] %v647
        %652 = vst [vmem:[%s244 + $0x8] sm:$0xf0] %v648
        %s653 = sand.u32 %s159, 1
        %s654 = scalar_lea.sflag [#allocation3], %s653
        %s655 = sand.u32 %s159, 1
        %s656 = smul.addr %s655, 16
        %s657 = scalar_lea.vmem [#allocation2], %s656
        // Predicated region
        $region45: #{tpu_custom_call.1} parent=43 // pred_check
          %p658 = pneg %p169
        $region46: #{tpu_custom_call.1} parent=43 // pred_check_branch
          %660 = sbr.rel (%p658) target = $region48
        $region47: #{tpu_custom_call.1} parent=43 // pred_region
          %s662 = ssub.s32 256, 256
          %663 = vsyncadd %s654, %s662
          %s664 = smul.addr %s20, 2
          %s665 = smul.addr %s664, 128
          %s666 = scalar_lea.hbm %s6, %s665
          %s668 = sshll.u32 %s657, 4
          %s669 = int_to_ptr.vmem [resolvable:$true] %s668
          %671 = dma.vmem_to_hbm [thread:$0]  %s669, 256, %s666, %s654
        $region48: #{tpu_custom_call.1} parent=43 // pred_fallthru
          _
      $region44: #{tpu_custom_call.1} parent=5 // pred_fallthru
        _
      %p672 = scmp.le.s32.totalorder 2, %s15
      // Predicated region
      $region49: #{tpu_custom_call.1} parent=5 // pred_check
        %p673 = pneg %p672
      $region50: #{tpu_custom_call.1} parent=5 // pred_check_branch
        %675 = sbr.rel (%p673) target = $region52
      $region51: #{tpu_custom_call.1} parent=5 // pred_region
        %s676 = ssub.s32 %s15, 2
        // Predicated region
        $region53: #{tpu_custom_call.1} parent=51 // pred_check
          %p677 = pneg %p175
        $region54: #{tpu_custom_call.1} parent=51 // pred_check_branch
          %679 = sbr.rel (%p677) target = $region56
        $region55: #{tpu_custom_call.1} parent=51 // pred_region
          %s680 = sand.u32 %s160, 1
          %s681 = scalar_lea.sflag [#allocation3], %s680
          %s682 = sand.u32 %s160, 1
          %s683 = smul.addr %s682, 16
          %s684 = scalar_lea.vmem [#allocation2], %s683
          %685 = dma.done %s681, 256
        $region56: #{tpu_custom_call.1} parent=51 // pred_fallthru
          _
      $region52: #{tpu_custom_call.1} parent=5 // pred_fallthru
        _
    $region6: #{tpu_custom_call.1} parent=1 // loop_footer
      %s19 = sadd.s32 1, %s15
    $region7: #{tpu_custom_call.1} parent=1 // loop_footer_branch
      %14 = sbr.rel target = $region3
    $region8: #{tpu_custom_call.1} parent=1 // loop_exit
      _
    %686 = vsyncpa [#allocation3], 1
    %s687 = scalar_lea.sflag [#allocation3], 1
    %688 = vsyncpa %s687, 1

</llo_original>
